<compile_context>
chip_gen: v7x
topology: tpu7x:2x2x1
jax: 0.10.0
libtpu: 0.0.40
codegen_flags: <defaults>
</compile_context>

<pallas_src>
import functools

import jax
import jax.numpy as jnp
from jax.experimental import pallas as pl
from jax.experimental.pallas import tpu as pltpu


def mlp_kernel(*refs, num_layers: int, apply_softmax: bool):
    """One batch tile: L x (matmul + bias [+ ReLU]), optional row softmax.

    refs = (x_ref, w1_ref, b1_ref, ..., wL_ref, bL_ref, o_ref)
    """
    x_ref, wb_refs, o_ref = refs[0], refs[1:-1], refs[-1]

    # Cast to bf16 for the MXU inside the kernel (VPU work hidden under DMA);
    # x streams from HBM in its native dtype.
    h = x_ref[...].astype(jnp.bfloat16)

    for layer in range(num_layers):
        w = wb_refs[2 * layer][...]        # bf16 [d_in, d_out], VMEM-resident
        b = wb_refs[2 * layer + 1][...]    # f32  [1, d_out]
        h = jnp.dot(h, w, preferred_element_type=jnp.float32) + b
        if layer < num_layers - 1:
            # ReLU in f32, re-quantize only for the next MXU operand.
            h = jnp.maximum(h, 0.0).astype(jnp.bfloat16)

    y = h  # f32 logits of the last layer
    if apply_softmax:
        # torch.softmax(x, dim=1) == softmax over the feature (last) axis here.
        m = jnp.max(y, axis=-1, keepdims=True)
        e = jnp.exp(y - m)
        s = jnp.sum(e, axis=-1, keepdims=True)
        y = e / s  # exact divide: rows must sum to 1 exactly (fixes prev. assert)

    # TODO(synk): d_out < 128 lanes keeps this a masked store; repacking the
    # output as a flat lane-dense ((tb*d_out)//128, 128) slab (and/or a bf16
    # output dtype) is the next store-side win once the in-kernel reshape is
    # validated on Mosaic for these shapes.
    o_ref[...] = y.astype(o_ref.dtype)


def _round_up(n: int, m: int) -> int:
    return ((n + m - 1) // m) * m


def _pick_batch_tile(B, dims, x_itemsize, out_itemsize,
                     max_batch_tile, vmem_budget_bytes):
    """Rows per grid step: as many as the VMEM budget allows (lane-padding aware),
    capped at max_batch_tile and at ceil(B/2) so the grid has >= 2 steps (v7x)."""
    d_in, rest = dims[0], dims[1:]
    lane_bytes = lambda d, nbytes: _round_up(max(d, 1), 128) * nbytes
    per_row = 2 * lane_bytes(d_in, x_itemsize)        # x block, double-buffered
    per_row += 2 * lane_bytes(rest[-1], out_itemsize)  # out block, double-buffered
    per_row += sum(lane_bytes(d, 4) for d in rest)      # f32 intermediates (worst case)
    tb = vmem_budget_bytes // per_row
    tb = min(tb, max_batch_tile)
    tb = min(tb, _round_up(pl.cdiv(B, 2), 8))  # >= 2 grid steps -> both v7x TCs get work
    return max(8, (tb // 8) * 8)                # sublane multiple of 8


def mlp_forward(x, params, *, max_batch_tile: int = 8192,
                vmem_budget_bytes: int = 20 * 1024 * 1024):
    """params = [(W1, b1), ..., (WL, bL)], W_i: [d_in, d_out], b_i: [1, d_out]."""
    B, d0 = x.shape
    dims = [d0] + [w.shape[1] for w, _ in params]
    d_out = dims[-1]
    num_layers = len(params)
    # f32 output to match the PyTorch module; bf16 is an option if the consumer
    # tolerates ~1e-3 softmax normalization error (halves writeback bytes).
    out_dtype = x.dtype

    tb = _pick_batch_tile(B, dims, x.dtype.itemsize, jnp.dtype(out_dtype).itemsize,
                          max_batch_tile, vmem_budget_bytes)
    grid = (pl.cdiv(B, tb),)  # no input padding: boundary block is masked

    resident = lambda i: (0, 0)  # same block every step -> stays VMEM-resident
    in_specs = [pl.BlockSpec((tb, d0), lambda i: (i, 0))]  # x: tiled over batch
    flat_args = [x]
    for w, b in params:
        wb = w.astype(jnp.bfloat16)  # tiny one-time cast; resident for all steps
        in_specs.append(pl.BlockSpec(wb.shape, resident))
        in_specs.append(pl.BlockSpec(b.shape, resident))
        flat_args.extend([wb, b])

    kernel = functools.partial(mlp_kernel, num_layers=num_layers,
                               apply_softmax=d_out > 1)
    return pl.pallas_call(
        kernel,
        out_shape=jax.ShapeDtypeStruct((B, d_out), out_dtype),
        grid=grid,
        in_specs=in_specs,
        out_specs=pl.BlockSpec((tb, d_out), lambda i: (i, 0)),
        compiler_params=pltpu.CompilerParams(
            dimension_semantics=("parallel",),   # shard batch across v7x's 2 TCs
            vmem_limit_bytes=32 * 1024 * 1024,   # > v5e 16MiB default, <= half v7x 64MiB
        ),
    )(*flat_args)


def init_linear(key, d_in, d_out):
    """Deterministic PyTorch-style nn.Linear init: U(-1/sqrt(fan_in), +1/sqrt(fan_in))."""
    kw, kb = jax.random.split(key)
    bound = 1.0 / jnp.sqrt(jnp.float32(d_in))
    w = jax.random.uniform(kw, (d_in, d_out), jnp.float32, -bound, bound)
    b = jax.random.uniform(kb, (1, d_out), jnp.float32, -bound, bound)
    return w, b


def reference_forward(x, params):
    """Pure-JAX f32 reference mirroring the PyTorch module."""
    h = x
    for i, (w, b) in enumerate(params):
        h = h @ w + b
        if i < len(params) - 1:
            h = jnp.maximum(h, 0.0)
    d_out = params[-1][0].shape[1]
    if d_out > 1:
        h = jax.nn.softmax(h, axis=1)
    return h


if __name__ == "__main__":
    # Shapes implied by the module: MLP(dims=[32, 64, 16, 8]).
    # batch=40: the auto-sizer picks tb=24 -> grid=(2,), exercising both the
    # multi-step grid (megacore path) and a masked boundary block (rows 40..47).
    dims = [32, 64, 16, 8]
    batch = 40

    key = jax.random.PRNGKey(0)
    k_x, k1, k2, k3 = jax.random.split(key, 4)

    x = jax.random.normal(k_x, (batch, dims[0]), jnp.float32)
    params = [
        init_linear(k1, dims[0], dims[1]),
        init_linear(k2, dims[1], dims[2]),
        init_linear(k3, dims[2], dims[3]),
    ]

    out = jax.block_until_ready(mlp_forward(x, params))
    ref = reference_forward(x, params)

    assert out.shape == (batch, dims[-1]), out.shape
    # bf16 matmul operands -> bf16-level tolerance vs the f32 reference.
    assert jnp.allclose(out, ref, atol=2e-2, rtol=2e-2), "mismatch vs reference"
    # Exact f32 softmax divide: rows sum to 1 to f32 precision.
    assert jnp.allclose(jnp.sum(out, axis=1), 1.0, atol=1e-5), "softmax rows not normalized"

    print("KERNEL_OK")
</pallas_src>

<mosaic_0001>
module attributes {stable_mosaic.version = 11 : i64} {
  func.func @mlp_kernel(%arg0: i32, %arg1: memref<24x32xf32, #tpu.memory_space<vmem>>, %arg2: memref<32x64xbf16, #tpu.memory_space<vmem>>, %arg3: memref<1x64xf32, #tpu.memory_space<vmem>>, %arg4: memref<64x16xbf16, #tpu.memory_space<vmem>>, %arg5: memref<1x16xf32, #tpu.memory_space<vmem>>, %arg6: memref<16x8xbf16, #tpu.memory_space<vmem>>, %arg7: memref<1x8xf32, #tpu.memory_space<vmem>>, %arg8: memref<24x8xf32, #tpu.memory_space<vmem>>) attributes {dimension_semantics = [#tpu.dimension_semantics<parallel>], iteration_bounds = array<i64: 2>, scalar_prefetch = 0 : i64, scratch_operands = 0 : i64, tpu.core_type = #tpu.core_type<tc>, window_params = [{transform_indices = @transform_0, window_bounds = array<i64: 24, 32>}, {pipeline_mode = #tpu.pipeline_mode<synchronous>, transform_indices = @transform_1, window_bounds = array<i64: 32, 64>}, {pipeline_mode = #tpu.pipeline_mode<synchronous>, transform_indices = @transform_2, window_bounds = array<i64: 1, 64>}, {pipeline_mode = #tpu.pipeline_mode<synchronous>, transform_indices = @transform_3, window_bounds = array<i64: 64, 16>}, {pipeline_mode = #tpu.pipeline_mode<synchronous>, transform_indices = @transform_4, window_bounds = array<i64: 1, 16>}, {pipeline_mode = #tpu.pipeline_mode<synchronous>, transform_indices = @transform_5, window_bounds = array<i64: 16, 8>}, {pipeline_mode = #tpu.pipeline_mode<synchronous>, transform_indices = @transform_6, window_bounds = array<i64: 1, 8>}, {transform_indices = @transform_7, window_bounds = array<i64: 24, 8>}]} {
    %c0 = arith.constant 0 : index
    %c0_0 = arith.constant 0 : index
    %0 = vector.load %arg1[%c0, %c0_0] : memref<24x32xf32, #tpu.memory_space<vmem>>, vector<24x32xf32>
    %1 = arith.truncf %0 : vector<24x32xf32> to vector<24x32xbf16>
    %c0_1 = arith.constant 0 : index
    %c0_2 = arith.constant 0 : index
    %2 = vector.load %arg2[%c0_1, %c0_2] : memref<32x64xbf16, #tpu.memory_space<vmem>>, vector<32x64xbf16>
    %c0_3 = arith.constant 0 : index
    %c0_4 = arith.constant 0 : index
    %3 = vector.load %arg3[%c0_3, %c0_4] : memref<1x64xf32, #tpu.memory_space<vmem>>, vector<1x64xf32>
    %cst = arith.constant dense<0.000000e+00> : vector<24x64xf32>
    %4 = tpu.matmul %1, %2, %cst {dimension_numbers = #tpu.dot_dimension_numbers<[1], [0], [0], [1], [0, 0, 1, 1], [], []>} : vector<24x32xbf16>, vector<32x64xbf16>, vector<24x64xf32> -> vector<24x64xf32>
    %5 = vector.broadcast %3 : vector<1x64xf32> to vector<24x64xf32>
    %6 = arith.addf %4, %5 : vector<24x64xf32>
    %cst_5 = arith.constant 0.000000e+00 : f32
    %7 = vector.broadcast %cst_5 : f32 to vector<24x64xf32>
    %8 = arith.maximumf %6, %7 : vector<24x64xf32>
    %9 = arith.truncf %8 : vector<24x64xf32> to vector<24x64xbf16>
    %c0_6 = arith.constant 0 : index
    %c0_7 = arith.constant 0 : index
    %10 = vector.load %arg4[%c0_6, %c0_7] : memref<64x16xbf16, #tpu.memory_space<vmem>>, vector<64x16xbf16>
    %c0_8 = arith.constant 0 : index
    %c0_9 = arith.constant 0 : index
    %11 = vector.load %arg5[%c0_8, %c0_9] : memref<1x16xf32, #tpu.memory_space<vmem>>, vector<1x16xf32>
    %cst_10 = arith.constant dense<0.000000e+00> : vector<24x16xf32>
    %12 = tpu.matmul %9, %10, %cst_10 {dimension_numbers = #tpu.dot_dimension_numbers<[1], [0], [0], [1], [0, 0, 1, 1], [], []>} : vector<24x64xbf16>, vector<64x16xbf16>, vector<24x16xf32> -> vector<24x16xf32>
    %13 = vector.broadcast %11 : vector<1x16xf32> to vector<24x16xf32>
    %14 = arith.addf %12, %13 : vector<24x16xf32>
    %cst_11 = arith.constant 0.000000e+00 : f32
    %15 = vector.broadcast %cst_11 : f32 to vector<24x16xf32>
    %16 = arith.maximumf %14, %15 : vector<24x16xf32>
    %17 = arith.truncf %16 : vector<24x16xf32> to vector<24x16xbf16>
    %c0_12 = arith.constant 0 : index
    %c0_13 = arith.constant 0 : index
    %18 = vector.load %arg6[%c0_12, %c0_13] : memref<16x8xbf16, #tpu.memory_space<vmem>>, vector<16x8xbf16>
    %c0_14 = arith.constant 0 : index
    %c0_15 = arith.constant 0 : index
    %19 = vector.load %arg7[%c0_14, %c0_15] : memref<1x8xf32, #tpu.memory_space<vmem>>, vector<1x8xf32>
    %cst_16 = arith.constant dense<0.000000e+00> : vector<24x8xf32>
    %20 = tpu.matmul %17, %18, %cst_16 {dimension_numbers = #tpu.dot_dimension_numbers<[1], [0], [0], [1], [0, 0, 1, 1], [], []>} : vector<24x16xbf16>, vector<16x8xbf16>, vector<24x8xf32> -> vector<24x8xf32>
    %21 = vector.broadcast %19 : vector<1x8xf32> to vector<24x8xf32>
    %22 = arith.addf %20, %21 : vector<24x8xf32>
    %cst_17 = arith.constant dense<0xFF800000> : vector<24xf32>
    %23 = vector.multi_reduction <maximumf>, %22, %cst_17 [1] : vector<24x8xf32> to vector<24xf32>
    %24 = vector.shape_cast %23 : vector<24xf32> to vector<24x1xf32>
    %25 = vector.broadcast %24 : vector<24x1xf32> to vector<24x8xf32>
    %26 = arith.subf %22, %25 : vector<24x8xf32>
    %27 = math.exp %26 : vector<24x8xf32>
    %cst_18 = arith.constant dense<0.000000e+00> : vector<24xf32>
    %28 = vector.multi_reduction <add>, %27, %cst_18 [1] : vector<24x8xf32> to vector<24xf32>
    %29 = vector.shape_cast %28 : vector<24xf32> to vector<24x1xf32>
    %30 = vector.broadcast %29 : vector<24x1xf32> to vector<24x8xf32>
    %31 = arith.divf %27, %30 : vector<24x8xf32>
    %c0_19 = arith.constant 0 : index
    %c0_20 = arith.constant 0 : index
    %32 = vector.load %arg8[%c0_19, %c0_20] : memref<24x8xf32, #tpu.memory_space<vmem>>, vector<24x8xf32>
    tpu.vector_store %arg8[%c0_19, %c0_20], %31 {strides = array<i32>} : memref<24x8xf32, #tpu.memory_space<vmem>>, vector<24x8xf32>,
    return
  }
  func.func @transform_0(%arg0: i32) -> (i32, i32) {
    %c0_i32 = arith.constant 0 : i32
    %c0_i32_0 = arith.constant 0 : i32
    return %arg0, %c0_i32 : i32, i32
  }
  func.func @transform_1(%arg0: i32) -> (i32, i32) {
    %c0_i32 = arith.constant 0 : i32
    %c0_i32_0 = arith.constant 0 : i32
    %c0_i32_1 = arith.constant 0 : i32
    return %c0_i32, %c0_i32_0 : i32, i32
  }
  func.func @transform_2(%arg0: i32) -> (i32, i32) {
    %c0_i32 = arith.constant 0 : i32
    %c0_i32_0 = arith.constant 0 : i32
    %c0_i32_1 = arith.constant 0 : i32
    return %c0_i32, %c0_i32_0 : i32, i32
  }
  func.func @transform_3(%arg0: i32) -> (i32, i32) {
    %c0_i32 = arith.constant 0 : i32
    %c0_i32_0 = arith.constant 0 : i32
    %c0_i32_1 = arith.constant 0 : i32
    return %c0_i32, %c0_i32_0 : i32, i32
  }
  func.func @transform_4(%arg0: i32) -> (i32, i32) {
    %c0_i32 = arith.constant 0 : i32
    %c0_i32_0 = arith.constant 0 : i32
    %c0_i32_1 = arith.constant 0 : i32
    return %c0_i32, %c0_i32_0 : i32, i32
  }
  func.func @transform_5(%arg0: i32) -> (i32, i32) {
    %c0_i32 = arith.constant 0 : i32
    %c0_i32_0 = arith.constant 0 : i32
    %c0_i32_1 = arith.constant 0 : i32
    return %c0_i32, %c0_i32_0 : i32, i32
  }
  func.func @transform_6(%arg0: i32) -> (i32, i32) {
    %c0_i32 = arith.constant 0 : i32
    %c0_i32_0 = arith.constant 0 : i32
    %c0_i32_1 = arith.constant 0 : i32
    return %c0_i32, %c0_i32_0 : i32, i32
  }
  func.func @transform_7(%arg0: i32) -> (i32, i32) {
    %c0_i32 = arith.constant 0 : i32
    %c0_i32_0 = arith.constant 0 : i32
    return %arg0, %c0_i32 : i32, i32
  }
}

</mosaic_0001>

<llo_original>
// kernel: tpu_custom_call.1
$region0: #{tpu_custom_call.1}
  #allocation0 [shape = 'u32[]', space=smem, size = 0x4, offset = 0x4, fixed_abs, tag = 'smem constant byte address 0x4 - core index']
  #allocation1 [shape = 'u32[144,128]{1,0:T(1,128)}', space=vmem, size = 0x12000, scoped, tag = 'internal scratch']
  %s0 = inlined_call_operand.vmem [shape: f32[40,32], index: 0, kind: input, shape index: {}]
  %s1 = inlined_call_operand.vmem [shape: bf16[32,64], index: 1, kind: input, shape index: {}]
  %s2 = inlined_call_operand.vmem [shape: f32[1,64], index: 2, kind: input, shape index: {}]
  %s3 = inlined_call_operand.vmem [shape: bf16[64,16], index: 3, kind: input, shape index: {}]
  %s4 = inlined_call_operand.vmem [shape: f32[1,16], index: 4, kind: input, shape index: {}]
  %s5 = inlined_call_operand.vmem [shape: bf16[16,8], index: 5, kind: input, shape index: {}]
  %s6 = inlined_call_operand.vmem [shape: f32[1,8], index: 6, kind: input, shape index: {}]
  %s7 = inlined_call_operand.vmem [shape: f32[40,8], index: 7, kind: output, shape index: {}]
  %s8 = sld [smem:[#allocation0]]
  $region109: #{tpu_custom_call.1} parent=0
    _
  %s10 = ssub.s32 1, %s8
  %s11 = scalar_select 0, %s10, %s8
  $region1: #{tpu_custom_call.1} parent=0
    #allocation2 [shape = 'u8[24576]{0}', space=vmem, size = 0x6000, scoped, tag = 'output window, operand 0']
    loop: start=0, step=1, limit=4
    $region2: #{tpu_custom_call.1} parent=1 // loop_pre_header
      _
    $region3: #{tpu_custom_call.1} parent=1 // loop_header
      %s13 = sphi 0, %s17
      %p14 = scmp.ge.s32.totalorder %s13, 4
      %s23 = sphi 0, %s25
      %s26 = sphi 0, %s23
      %s27 = sphi 0, %s26
      %s43 = sphi 0, %s27
      %s47 = sphi 0, %s47
      %s49 = sphi 0, %s47
      %s50 = sphi 0, %s49
      %s64 = sphi 0, %s50
      %s68 = sphi 0, %s68
      %s70 = sphi 0, %s68
      %s71 = sphi 0, %s70
      %s85 = sphi 0, %s71
      %s89 = sphi 0, %s89
      %s91 = sphi 0, %s89
      %s92 = sphi 0, %s91
      %s106 = sphi 0, %s92
      %s110 = sphi 0, %s110
      %s112 = sphi 0, %s110
      %s113 = sphi 0, %s112
      %s127 = sphi 0, %s113
      %s131 = sphi 0, %s131
      %s133 = sphi 0, %s131
      %s134 = sphi 0, %s133
      %s148 = sphi 0, %s134
      %s152 = sphi 0, %s152
      %s154 = sphi 0, %s152
      %s155 = sphi 0, %s154
      %s169 = sphi 0, %s155
      %s175 = sphi 0, %s177
      %s178 = sphi 0, %s175
      %s179 = sphi 0, %s178
      %s195 = sphi 0, %s179
    $region4: #{tpu_custom_call.1} parent=1 // loop_header_branch
      %16 = sbr.rel (%p14) target = $region8
    $region5: #{tpu_custom_call.1} parent=1 // loop_body
      %s18 = ssub.s32 %s13, 1
      %s19 = ssub.s32 %s13, 2
      %s20 = sadd.s32 %s13, 1
      %s21 = ssub.s32 %s13, %s20
      %p22 = scmp.eq.s32.totalorder %s21, 0
      %s24 = sadd.s32 %s23, 1
      %s25 = scalar_select %p22, %s23, %s24
      %p28 = pneg %p22
      %p29 = scmp.eq.s32.totalorder %s13, 1
      %p30 = por %p28, %p29
      %p31 = scmp.ne.s32.totalorder %s23, %s26
      %p32 = scmp.eq.s32.totalorder %s13, 0
      %p33 = por %p31, %p32
      %p34 = scmp.ne.s32.totalorder %s23, %s26
      %p35 = scmp.eq.s32.totalorder %s18, 1
      %p36 = por %p34, %p35
      %p37 = scmp.ne.s32.totalorder %s26, %s27
      %p38 = scmp.eq.s32.totalorder %s18, 0
      %p39 = por %p37, %p38
      %p40 = scmp.ne.s32.totalorder %s26, %s27
      %p41 = scmp.eq.s32.totalorder %s19, 1
      %p42 = por %p40, %p41
      %p44 = scmp.ne.s32.totalorder %s27, %s43
      %p45 = scmp.eq.s32.totalorder %s19, 0
      %p46 = por %p44, %p45
      %s48 = sadd.s32 %s47, 1
      %p51 = scmp.eq.s32.totalorder %s13, 1
      %p52 = scmp.ne.s32.totalorder %s47, %s49
      %p53 = scmp.eq.s32.totalorder %s13, 0
      %p54 = por %p52, %p53
      %p55 = scmp.ne.s32.totalorder %s47, %s49
      %p56 = scmp.eq.s32.totalorder %s18, 1
      %p57 = por %p55, %p56
      %p58 = scmp.ne.s32.totalorder %s49, %s50
      %p59 = scmp.eq.s32.totalorder %s18, 0
      %p60 = por %p58, %p59
      %p61 = scmp.ne.s32.totalorder %s49, %s50
      %p62 = scmp.eq.s32.totalorder %s19, 1
      %p63 = por %p61, %p62
      %p65 = scmp.ne.s32.totalorder %s50, %s64
      %p66 = scmp.eq.s32.totalorder %s19, 0
      %p67 = por %p65, %p66
      %s69 = sadd.s32 %s68, 1
      %p72 = scmp.eq.s32.totalorder %s13, 1
      %p73 = scmp.ne.s32.totalorder %s68, %s70
      %p74 = scmp.eq.s32.totalorder %s13, 0
      %p75 = por %p73, %p74
      %p76 = scmp.ne.s32.totalorder %s68, %s70
      %p77 = scmp.eq.s32.totalorder %s18, 1
      %p78 = por %p76, %p77
      %p79 = scmp.ne.s32.totalorder %s70, %s71
      %p80 = scmp.eq.s32.totalorder %s18, 0
      %p81 = por %p79, %p80
      %p82 = scmp.ne.s32.totalorder %s70, %s71
      %p83 = scmp.eq.s32.totalorder %s19, 1
      %p84 = por %p82, %p83
      %p86 = scmp.ne.s32.totalorder %s71, %s85
      %p87 = scmp.eq.s32.totalorder %s19, 0
      %p88 = por %p86, %p87
      %s90 = sadd.s32 %s89, 1
      %p93 = scmp.eq.s32.totalorder %s13, 1
      %p94 = scmp.ne.s32.totalorder %s89, %s91
      %p95 = scmp.eq.s32.totalorder %s13, 0
      %p96 = por %p94, %p95
      %p97 = scmp.ne.s32.totalorder %s89, %s91
      %p98 = scmp.eq.s32.totalorder %s18, 1
      %p99 = por %p97, %p98
      %p100 = scmp.ne.s32.totalorder %s91, %s92
      %p101 = scmp.eq.s32.totalorder %s18, 0
      %p102 = por %p100, %p101
      %p103 = scmp.ne.s32.totalorder %s91, %s92
      %p104 = scmp.eq.s32.totalorder %s19, 1
      %p105 = por %p103, %p104
      %p107 = scmp.ne.s32.totalorder %s92, %s106
      %p108 = scmp.eq.s32.totalorder %s19, 0
      %p109 = por %p107, %p108
      %s111 = sadd.s32 %s110, 1
      %p114 = scmp.eq.s32.totalorder %s13, 1
      %p115 = scmp.ne.s32.totalorder %s110, %s112
      %p116 = scmp.eq.s32.totalorder %s13, 0
      %p117 = por %p115, %p116
      %p118 = scmp.ne.s32.totalorder %s110, %s112
      %p119 = scmp.eq.s32.totalorder %s18, 1
      %p120 = por %p118, %p119
      %p121 = scmp.ne.s32.totalorder %s112, %s113
      %p122 = scmp.eq.s32.totalorder %s18, 0
      %p123 = por %p121, %p122
      %p124 = scmp.ne.s32.totalorder %s112, %s113
      %p125 = scmp.eq.s32.totalorder %s19, 1
      %p126 = por %p124, %p125
      %p128 = scmp.ne.s32.totalorder %s113, %s127
      %p129 = scmp.eq.s32.totalorder %s19, 0
      %p130 = por %p128, %p129
      %s132 = sadd.s32 %s131, 1
      %p135 = scmp.eq.s32.totalorder %s13, 1
      %p136 = scmp.ne.s32.totalorder %s131, %s133
      %p137 = scmp.eq.s32.totalorder %s13, 0
      %p138 = por %p136, %p137
      %p139 = scmp.ne.s32.totalorder %s131, %s133
      %p140 = scmp.eq.s32.totalorder %s18, 1
      %p141 = por %p139, %p140
      %p142 = scmp.ne.s32.totalorder %s133, %s134
      %p143 = scmp.eq.s32.totalorder %s18, 0
      %p144 = por %p142, %p143
      %p145 = scmp.ne.s32.totalorder %s133, %s134
      %p146 = scmp.eq.s32.totalorder %s19, 1
      %p147 = por %p145, %p146
      %p149 = scmp.ne.s32.totalorder %s134, %s148
      %p150 = scmp.eq.s32.totalorder %s19, 0
      %p151 = por %p149, %p150
      %s153 = sadd.s32 %s152, 1
      %p156 = scmp.eq.s32.totalorder %s13, 1
      %p157 = scmp.ne.s32.totalorder %s152, %s154
      %p158 = scmp.eq.s32.totalorder %s13, 0
      %p159 = por %p157, %p158
      %p160 = scmp.ne.s32.totalorder %s152, %s154
      %p161 = scmp.eq.s32.totalorder %s18, 1
      %p162 = por %p160, %p161
      %p163 = scmp.ne.s32.totalorder %s154, %s155
      %p164 = scmp.eq.s32.totalorder %s18, 0
      %p165 = por %p163, %p164
      %p166 = scmp.ne.s32.totalorder %s154, %s155
      %p167 = scmp.eq.s32.totalorder %s19, 1
      %p168 = por %p166, %p167
      %p170 = scmp.ne.s32.totalorder %s155, %s169
      %p171 = scmp.eq.s32.totalorder %s19, 0
      %p172 = por %p170, %p171
      %s173 = ssub.s32 %s13, %s20
      %p174 = scmp.eq.s32.totalorder %s173, 0
      %s176 = sadd.s32 %s175, 1
      %s177 = scalar_select %p174, %s175, %s176
      %p180 = pneg %p174
      %p181 = scmp.eq.s32.totalorder %s13, 1
      %p182 = por %p180, %p181
      %p183 = scmp.ne.s32.totalorder %s175, %s178
      %p184 = scmp.eq.s32.totalorder %s13, 0
      %p185 = por %p183, %p184
      %p186 = scmp.ne.s32.totalorder %s175, %s178
      %p187 = scmp.eq.s32.totalorder %s18, 1
      %p188 = por %p186, %p187
      %p189 = scmp.ne.s32.totalorder %s178, %s179
      %p190 = scmp.eq.s32.totalorder %s18, 0
      %p191 = por %p189, %p190
      %p192 = scmp.ne.s32.totalorder %s178, %s179
      %p193 = scmp.eq.s32.totalorder %s19, 1
      %p194 = por %p192, %p193
      %p196 = scmp.ne.s32.totalorder %s179, %s195
      %p197 = scmp.eq.s32.totalorder %s19, 0
      %p198 = por %p196, %p197
      %p199 = scmp.le.s32.totalorder 1, %s13
      %p200 = scmp.lt.s32.totalorder %s13, 3
      %p201 = pnand %p199, %p200
      %p202 = pneg %p201
      // Predicated region
      $region9: #{tpu_custom_call.1} parent=5 // pred_check
        _
      $region10: #{tpu_custom_call.1} parent=5 // pred_check_branch
        %204 = sbr.rel (%p201) target = $region12
      $region11: #{tpu_custom_call.1} parent=5 // pred_region
        %s205 = ssub.s32 %s13, 1
        // Predicated region
        $region13: #{tpu_custom_call.1} parent=11 // pred_check
          %p206 = pneg %p60
        $region14: #{tpu_custom_call.1} parent=11 // pred_check_branch
          %208 = sbr.rel (%p206) target = $region16
        $region15: #{tpu_custom_call.1} parent=11 // pred_region
          _
        $region16: #{tpu_custom_call.1} parent=11 // pred_fallthru
          _
        // Predicated region
        $region17: #{tpu_custom_call.1} parent=11 // pred_check
          %p209 = pneg %p81
        $region18: #{tpu_custom_call.1} parent=11 // pred_check_branch
          %211 = sbr.rel (%p209) target = $region20
        $region19: #{tpu_custom_call.1} parent=11 // pred_region
          _
        $region20: #{tpu_custom_call.1} parent=11 // pred_fallthru
          _
        // Predicated region
        $region21: #{tpu_custom_call.1} parent=11 // pred_check
          %p212 = pneg %p102
        $region22: #{tpu_custom_call.1} parent=11 // pred_check_branch
          %214 = sbr.rel (%p212) target = $region24
        $region23: #{tpu_custom_call.1} parent=11 // pred_region
          _
        $region24: #{tpu_custom_call.1} parent=11 // pred_fallthru
          _
        // Predicated region
        $region25: #{tpu_custom_call.1} parent=11 // pred_check
          %p215 = pneg %p123
        $region26: #{tpu_custom_call.1} parent=11 // pred_check_branch
          %217 = sbr.rel (%p215) target = $region28
        $region27: #{tpu_custom_call.1} parent=11 // pred_region
          _
        $region28: #{tpu_custom_call.1} parent=11 // pred_fallthru
          _
        // Predicated region
        $region29: #{tpu_custom_call.1} parent=11 // pred_check
          %p218 = pneg %p144
        $region30: #{tpu_custom_call.1} parent=11 // pred_check_branch
          %220 = sbr.rel (%p218) target = $region32
        $region31: #{tpu_custom_call.1} parent=11 // pred_region
          _
        $region32: #{tpu_custom_call.1} parent=11 // pred_fallthru
          _
        // Predicated region
        $region33: #{tpu_custom_call.1} parent=11 // pred_check
          %p221 = pneg %p165
        $region34: #{tpu_custom_call.1} parent=11 // pred_check_branch
          %223 = sbr.rel (%p221) target = $region36
        $region35: #{tpu_custom_call.1} parent=11 // pred_region
          _
        $region36: #{tpu_custom_call.1} parent=11 // pred_fallthru
          _
      $region12: #{tpu_custom_call.1} parent=5 // pred_fallthru
        _
      %p224 = scmp.lt.s32.totalorder %s13, 2
      // Predicated region
      $region37: #{tpu_custom_call.1} parent=5 // pred_check
        %p225 = pneg %p224
      $region38: #{tpu_custom_call.1} parent=5 // pred_check_branch
        %227 = sbr.rel (%p225) target = $region40
      $region39: #{tpu_custom_call.1} parent=5 // pred_region
        // Predicated region
        $region41: #{tpu_custom_call.1} parent=39 // pred_check
          %p228 = pneg %p33
        $region42: #{tpu_custom_call.1} parent=39 // pred_check_branch
          %230 = sbr.rel (%p228) target = $region44
        $region43: #{tpu_custom_call.1} parent=39 // pred_region
          %s231 = smul.u32 3, %s13
          %s232 = ssub.s32 5, %s231
          %p233 = scmp.lt.s32.totalorder %s232, 3
          %s234 = scalar_select %p233, %s232, 3
          %s235 = smul.u32 128, %s234
          %p236 = scmp.lt.s32.totalorder %s231, 4
          %s237 = scalar_select %p236, %s231, 4
          %s238 = smul.addr %s237, 8
          %s239 = scalar_lea.vmem %s0, %s238
          %s240 = smul.u32 3, %s13
          %s241 = ssub.s32 5, %s240
          %p242 = scmp.lt.s32.totalorder %s241, 3
          %s243 = scalar_select %p242, %s241, 3
          %s244 = smul.u32 128, %s243
        $region44: #{tpu_custom_call.1} parent=39 // pred_fallthru
          _
      $region40: #{tpu_custom_call.1} parent=5 // pred_fallthru
        _
      %p245 = scmp.le.s32.totalorder 1, %s13
      %p246 = scmp.lt.s32.totalorder %s13, 3
      %p247 = pnand %p245, %p246
      %p248 = pneg %p247
      // Predicated region
      $region45: #{tpu_custom_call.1} parent=5 // pred_check
        _
      $region46: #{tpu_custom_call.1} parent=5 // pred_check_branch
        %250 = sbr.rel (%p247) target = $region48
      $region47: #{tpu_custom_call.1} parent=5 // pred_region
        %s251 = ssub.s32 %s13, 1
        %s252 = smul.u32 3, %s18
        %s253 = ssub.s32 5, %s252
        %p254 = scmp.lt.s32.totalorder %s253, 3
        %s255 = scalar_select %p254, %s253, 3
        %s256 = smul.u32 128, %s255
        %p257 = scmp.lt.s32.totalorder %s252, 4
        %s258 = scalar_select %p257, %s252, 4
        %s259 = smul.addr %s258, 8
        %s260 = scalar_lea.vmem %s0, %s259
        %p261 = pneg %p39
        %p262 = pneg %p36
        %p263 = pneg %p60
        %p264 = pneg %p57
        %p265 = pneg %p81
        %p266 = pneg %p78
        %p267 = pneg %p102
        %p268 = pneg %p99
        %p269 = pneg %p123
        %p270 = pneg %p120
        %p271 = pneg %p144
        %p272 = pneg %p141
        %p273 = pneg %p165
        %p274 = pneg %p162
        %p275 = pneg %p191
        %p276 = pneg %p188
        %s277 = sand.u32 %s178, 1
        %s278 = sand.u32 %s178, 1
        %s279 = smul.addr %s278, 24
        %s280 = scalar_lea.vmem [#allocation2], %s279
        %s281 = smul.u32 3, %s18
        %s282 = ssub.s32 5, %s281
        %p283 = scmp.lt.s32.totalorder %s282, 3
        %s284 = scalar_select %p283, %s282, 3
        %s285 = smul.u32 128, %s284
        %p286 = scmp.lt.s32.totalorder %s281, 4
        %s287 = scalar_select %p286, %s281, 4
        %s288 = smul.addr %s287, 8
        %s289 = scalar_lea.vmem %s0, %s288
        %s290 = smul.u32 3, %s18
        %s291 = ssub.s32 5, %s290
        %p292 = scmp.lt.s32.totalorder %s291, 3
        %s293 = scalar_select %p292, %s291, 3
        %s294 = smul.u32 128, %s293
        %s295 = smul.u32 3, %s18
        %s296 = ssub.s32 5, %s295
        %p297 = scmp.lt.s32.totalorder %s296, 3
        %s298 = scalar_select %p297, %s296, 3
        %s299 = smul.u32 128, %s298
        %v301 = vld [vmem:[%s289] sm:$0xff]
        %v302 = vld [vmem:[%s289 + $0x8] sm:$0xff]
        %v303 = vld [vmem:[%s289 + $0x10] sm:$0xff]
        %v304 = vpack.c.bf16 %v302, %v301
        %v305 = vpack.c.bf16 %v303, %v303
        %v306 = vld [vmem:[%s1] sm:$0xf]
        %v307 = vld [vmem:[%s1 + $0x4] sm:$0xf]
        %v308 = vld [vmem:[%s1 + $0x8] sm:$0xf]
        %v309 = vld [vmem:[%s1 + $0xc] sm:$0xf]
        %v310 = vld [vmem:[%s2] sm:$0x1]
        %v312 = vlaneseq
        %v313 = vshrl.u32 %v312, 7
        %v314 = vsub.s32 0, %v313
        %v315 = vrot.slane %v310, %v314
        %v321 = vunpack.c.l.b16 %v306
        %v322 = vunpack.c.l.b16 %v307
        %v323 = vunpack.c.l.b16 %v308
        %v324 = vunpack.c.l.b16 %v309
        %v325 = vpack.c.b16 %v322, %v321
        %v326 = vpack.c.b16 %v324, %v323
        %vm329 = vcmask 261120
        %v331 = vsel %vm329, %v304, 0
        %v334 = vsel %vm329, %v305, 0
        %336 = vmatprep.subr.bf16.mxu0 0
        %337 = vmatpush1.bf16.msra.mxu0 %v325
        %338 = vmatprep.subr.bf16.mxu0 0
        %339 = vmatpush1.bf16.msra.mxu0 %v326
        %340 = vmatprep.subr.bf16.mxu0 0
        %341 = vmatpush1.bf16.msra.mxu0 0
        %342 = vmatprep.subr.bf16.mxu0 0
        %343 = vmatpush1.bf16.msra.mxu0 0
        %344 = vmatprep.subr.bf16.mxu0 0
        %345 = vmatpush1.bf16.msra.mxu0 0
        %346 = vmatprep.subr.bf16.mxu0 0
        %347 = vmatpush1.bf16.msra.mxu0 0
        %348 = vmatprep.subr.bf16.mxu0 0
        %349 = vmatpush1.bf16.msra.mxu0 0
        %350 = vmatprep.subr.bf16.mxu0 0
        %351 = vmatpush1.bf16.msra.mxu0 0
        %352 = vmatprep.subr.bf16.mxu0 0
        %353 = vmatpush1.bf16.msra.mxu0 0
        %354 = vmatprep.subr.bf16.mxu0 0
        %355 = vmatpush1.bf16.msra.mxu0 0
        %356 = vmatprep.subr.bf16.mxu0 0
        %357 = vmatpush1.bf16.msra.mxu0 0
        %358 = vmatprep.subr.bf16.mxu0 0
        %359 = vmatpush1.bf16.msra.mxu0 0
        %360 = vmatprep.subr.bf16.mxu0 0
        %361 = vmatpush1.bf16.msra.mxu0 0
        %362 = vmatprep.subr.bf16.mxu0 0
        %363 = vmatpush1.bf16.msra.mxu0 0
        %364 = vmatprep.subr.bf16.mxu0 0
        %365 = vmatpush1.bf16.msra.mxu0 0
        %366 = vmatprep.subr.bf16.mxu0 0
        %367 = vmatpush1.bf16.msra.mxu0 0
        %368 = vmatprep.mubr.bf16.mxu0 0
        %369 = vmatmul.mubr.bf16.gmra.mrb[0].mxu0 %v331
        %v370 = vpop.f32.mrb[0].mxu0
        %v371 = vadd.f32 %v315, %v370
        %v372 = vpop.f32.mrb[0].mxu0
        %v373 = vpop.f32.mrb[0].mxu0
        %v374 = vadd.f32 %v315, %v373
        %v375 = vpop.f32.mrb[0].mxu0
        %376 = vmatprep.mubr.bf16.mxu0 0
        %377 = vmatmul.mubr.bf16.gmra.mrb[0].mxu0 %v334
        %v378 = vpop.f32.mrb[0].mxu0
        %v379 = vadd.f32 %v315, %v378
        %v380 = vpop.f32.mrb[0].mxu0
        %v381 = vpop.f32.mrb[0].mxu0
        %v382 = vpop.f32.mrb[0].mxu0
        %383 = vdwg.mxu0
        %v384 = vmax.f32 %v371, 0.0
        %v385 = vmax.f32 %v374, 0.0
        %v386 = vmax.f32 %v379, 0.0
        %v387 = vpack.c.bf16 %v385, %v384
        %v388 = vpack.c.bf16 %v386, %v386
        %v389 = vld [vmem:[%s3] sm:$0xf]
        %v390 = vld [vmem:[%s3 + $0x4] sm:$0xf]
        %v391 = vld [vmem:[%s3 + $0x8] sm:$0xf]
        %v392 = vld [vmem:[%s3 + $0xc] sm:$0xf]
        %v393 = vld [vmem:[%s3 + $0x10] sm:$0xf]
        %v394 = vld [vmem:[%s3 + $0x14] sm:$0xf]
        %v395 = vld [vmem:[%s3 + $0x18] sm:$0xf]
        %v396 = vld [vmem:[%s3 + $0x1c] sm:$0xf]
        %v397 = vld [vmem:[%s4] sm:$0x1]
        %v399 = vlaneseq
        %v400 = vshrl.u32 %v399, 7
        %v401 = vsub.s32 0, %v400
        %v402 = vrot.slane %v397, %v401
        %v412 = vunpack.c.l.b16 %v389
        %v413 = vunpack.c.l.b16 %v390
        %v414 = vunpack.c.l.b16 %v391
        %v415 = vunpack.c.l.b16 %v392
        %v416 = vunpack.c.l.b16 %v393
        %v417 = vunpack.c.l.b16 %v394
        %v418 = vunpack.c.l.b16 %v395
        %v419 = vunpack.c.l.b16 %v396
        %v420 = vpack.c.b16 %v413, %v412
        %v421 = vpack.c.b16 %v415, %v414
        %v422 = vpack.c.b16 %v417, %v416
        %v423 = vpack.c.b16 %v419, %v418
        %vm428 = vcmask 523264
        %v430 = vsel %vm428, %v387, 0
        %v433 = vsel %vm428, %v388, 0
        %435 = vmatprep.subr.bf16.mxu0 0
        %436 = vmatpush1.bf16.msra.mxu0 %v420
        %437 = vmatprep.subr.bf16.mxu0 0
        %438 = vmatpush1.bf16.msra.mxu0 %v421
        %439 = vmatprep.subr.bf16.mxu0 0
        %440 = vmatpush1.bf16.msra.mxu0 %v422
        %441 = vmatprep.subr.bf16.mxu0 0
        %442 = vmatpush1.bf16.msra.mxu0 %v423
        %443 = vmatprep.subr.bf16.mxu0 0
        %444 = vmatpush1.bf16.msra.mxu0 0
        %445 = vmatprep.subr.bf16.mxu0 0
        %446 = vmatpush1.bf16.msra.mxu0 0
        %447 = vmatprep.subr.bf16.mxu0 0
        %448 = vmatpush1.bf16.msra.mxu0 0
        %449 = vmatprep.subr.bf16.mxu0 0
        %450 = vmatpush1.bf16.msra.mxu0 0
        %451 = vmatprep.subr.bf16.mxu0 0
        %452 = vmatpush1.bf16.msra.mxu0 0
        %453 = vmatprep.subr.bf16.mxu0 0
        %454 = vmatpush1.bf16.msra.mxu0 0
        %455 = vmatprep.subr.bf16.mxu0 0
        %456 = vmatpush1.bf16.msra.mxu0 0
        %457 = vmatprep.subr.bf16.mxu0 0
        %458 = vmatpush1.bf16.msra.mxu0 0
        %459 = vmatprep.subr.bf16.mxu0 0
        %460 = vmatpush1.bf16.msra.mxu0 0
        %461 = vmatprep.subr.bf16.mxu0 0
        %462 = vmatpush1.bf16.msra.mxu0 0
        %463 = vmatprep.subr.bf16.mxu0 0
        %464 = vmatpush1.bf16.msra.mxu0 0
        %465 = vmatprep.subr.bf16.mxu0 0
        %466 = vmatpush1.bf16.msra.mxu0 0
        %467 = vmatprep.mubr.bf16.mxu0 0
        %468 = vmatmul.mubr.bf16.gmra.mrb[0].mxu0 %v430
        %v469 = vpop.f32.mrb[0].mxu0
        %v470 = vadd.f32 %v402, %v469
        %v471 = vpop.f32.mrb[0].mxu0
        %v472 = vpop.f32.mrb[0].mxu0
        %v473 = vadd.f32 %v402, %v472
        %v474 = vpop.f32.mrb[0].mxu0
        %475 = vmatprep.mubr.bf16.mxu0 0
        %476 = vmatmul.mubr.bf16.gmra.mrb[0].mxu0 %v433
        %v477 = vpop.f32.mrb[0].mxu0
        %v478 = vadd.f32 %v402, %v477
        %v479 = vpop.f32.mrb[0].mxu0
        %v480 = vpop.f32.mrb[0].mxu0
        %v481 = vpop.f32.mrb[0].mxu0
        %482 = vdwg.mxu0
        %v483 = vmax.f32 %v470, 0.0
        %v484 = vmax.f32 %v473, 0.0
        %v485 = vmax.f32 %v478, 0.0
        %v486 = vpack.c.bf16 %v484, %v483
        %v487 = vpack.c.bf16 %v485, %v485
        %v488 = vld [vmem:[%s5] sm:$0xf]
        %v489 = vld [vmem:[%s5 + $0x4] sm:$0xf]
        %v490 = vld [vmem:[%s6] sm:$0x1]
        %v492 = vlaneseq
        %v493 = vshrl.u32 %v492, 7
        %v494 = vsub.s32 0, %v493
        %v495 = vrot.slane %v490, %v494
        %v499 = vunpack.c.l.b16 %v488
        %v500 = vunpack.c.l.b16 %v489
        %v501 = vpack.c.b16 %v500, %v499
        %vm503 = vcmask 130048
        %v505 = vsel %vm503, %v486, 0
        %v508 = vsel %vm503, %v487, 0
        %510 = vmatprep.subr.bf16.mxu0 0
        %511 = vmatpush1.bf16.msra.mxu0 %v501
        %512 = vmatprep.subr.bf16.mxu0 0
        %513 = vmatpush1.bf16.msra.mxu0 0
        %514 = vmatprep.subr.bf16.mxu0 0
        %515 = vmatpush1.bf16.msra.mxu0 0
        %516 = vmatprep.subr.bf16.mxu0 0
        %517 = vmatpush1.bf16.msra.mxu0 0
        %518 = vmatprep.subr.bf16.mxu0 0
        %519 = vmatpush1.bf16.msra.mxu0 0
        %520 = vmatprep.subr.bf16.mxu0 0
        %521 = vmatpush1.bf16.msra.mxu0 0
        %522 = vmatprep.subr.bf16.mxu0 0
        %523 = vmatpush1.bf16.msra.mxu0 0
        %524 = vmatprep.subr.bf16.mxu0 0
        %525 = vmatpush1.bf16.msra.mxu0 0
        %526 = vmatprep.subr.bf16.mxu0 0
        %527 = vmatpush1.bf16.msra.mxu0 0
        %528 = vmatprep.subr.bf16.mxu0 0
        %529 = vmatpush1.bf16.msra.mxu0 0
        %530 = vmatprep.subr.bf16.mxu0 0
        %531 = vmatpush1.bf16.msra.mxu0 0
        %532 = vmatprep.subr.bf16.mxu0 0
        %533 = vmatpush1.bf16.msra.mxu0 0
        %534 = vmatprep.subr.bf16.mxu0 0
        %535 = vmatpush1.bf16.msra.mxu0 0
        %536 = vmatprep.subr.bf16.mxu0 0
        %537 = vmatpush1.bf16.msra.mxu0 0
        %538 = vmatprep.subr.bf16.mxu0 0
        %539 = vmatpush1.bf16.msra.mxu0 0
        %540 = vmatprep.subr.bf16.mxu0 0
        %541 = vmatpush1.bf16.msra.mxu0 0
        %542 = vmatprep.mubr.bf16.mxu0 0
        %543 = vmatmul.mubr.bf16.gmra.mrb[0].mxu0 %v505
        %v544 = vpop.f32.mrb[0].mxu0
        %v545 = vadd.f32 %v495, %v544
        %v546 = vpop.f32.mrb[0].mxu0
        %v547 = vpop.f32.mrb[0].mxu0
        %v548 = vadd.f32 %v495, %v547
        %v549 = vpop.f32.mrb[0].mxu0
        %550 = vmatprep.mubr.bf16.mxu0 0
        %551 = vmatmul.mubr.bf16.gmra.mrb[0].mxu0 %v508
        %v552 = vpop.f32.mrb[0].mxu0
        %v553 = vadd.f32 %v495, %v552
        %v554 = vpop.f32.mrb[0].mxu0
        %v555 = vpop.f32.mrb[0].mxu0
        %v556 = vpop.f32.mrb[0].mxu0
        %557 = vdwg.mxu0
        %vm558 = vcmask 64512
        %v559 = vsel %vm558, %v545, -inf
        %560 = vmax.xlane.f32.xlu0 %v559
        %v561 = vpop.xlane.xlu0 %560
        %v562 = vsel %vm558, %v548, -inf
        %563 = vmax.xlane.f32.xlu0 %v562
        %v564 = vpop.xlane.xlu0 %563
        %v565 = vsel %vm558, %v553, -inf
        %566 = vmax.xlane.f32.xlu0 %v565
        %v567 = vpop.xlane.xlu0 %566
        %v568 = vsub.f32 %v545, %v561
        %v569 = vsub.f32 %v548, %v564
        %v570 = vsub.f32 %v553, %v567
        %v571 = vmul.f32 %v568, 1.442695
        %v572 = vpow.pop %v571
        %v573 = vmul.f32 %v569, 1.442695
        %v574 = vpow.pop %v573
        %v575 = vmul.f32 %v570, 1.442695
        %v576 = vpow.pop %v575
        %v577 = vsel %vm558, %v572, 0.0
        %578 = vadd.xlane.f32.xlu0 %v577
        %v579 = vpop.xlane.xlu0 %578
        %v580 = vsel %vm558, %v574, 0.0
        %581 = vadd.xlane.f32.xlu0 %v580
        %v582 = vpop.xlane.xlu0 %581
        %v583 = vsel %vm558, %v576, 0.0
        %584 = vadd.xlane.f32.xlu0 %v583
        %v585 = vpop.xlane.xlu0 %584
        %v586 = vrcp.pop %v579
        %v587 = vmul.f32 %v572, %v586
        %v588 = vrcp.pop %v582
        %v589 = vmul.f32 %v574, %v588
        %v590 = vrcp.pop %v585
        %v591 = vmul.f32 %v576, %v590
        %592 = vst.msk [vmem:[%s280] sm:$0xff] %vm558, %v587
        %593 = vst.msk [vmem:[%s280 + $0x8] sm:$0xff] %vm558, %v589
        %594 = vst.msk [vmem:[%s280 + $0x10] sm:$0xff] %vm558, %v591
        %s595 = sand.u32 %s178, 1
        %s596 = sand.u32 %s178, 1
        %s597 = smul.addr %s596, 24
        %s598 = scalar_lea.vmem [#allocation2], %s597
        // Predicated region
        $region49: #{tpu_custom_call.1} parent=47 // pred_check
          %p599 = pneg %p188
        $region50: #{tpu_custom_call.1} parent=47 // pred_check_branch
          %601 = sbr.rel (%p599) target = $region52
        $region51: #{tpu_custom_call.1} parent=47 // pred_region
          %s602 = smul.u32 3, %s18
          %s603 = ssub.s32 5, %s602
          %p604 = scmp.lt.s32.totalorder %s603, 3
          %s605 = scalar_select %p604, %s603, 3
          %s606 = smul.u32 128, %s605
          %p607 = scmp.ne.s32.totalorder 0, %s606
          %s608 = smul.addr %s602, 8
          %s609 = scalar_lea.vmem %s7, %s608
          // Predicated region
          $region53: #{tpu_custom_call.1} parent=51 // pred_check
            %p610 = pneg %p607
          $region54: #{tpu_custom_call.1} parent=51 // pred_check_branch
            %612 = sbr.rel (%p610) target = $region56
          $region55: #{tpu_custom_call.1} parent=51 // pred_region
            // Predicated region
            $region57: #{tpu_custom_call.1} parent=55 // pred_check
              _
            $region58: #{tpu_custom_call.1} parent=55 // pred_check_branch
              %614 = sbr.rel (0) target = $region60
            $region59: #{tpu_custom_call.1} parent=55 // pred_region
              // Predicated region
              $region79: #{tpu_custom_call.1} parent=59 // pred_check
                _
              $region80: #{tpu_custom_call.1} parent=59 // pred_check_branch
                %668 = sbr.rel (0) target = $region82
              $region81: #{tpu_custom_call.1} parent=59 // pred_region
                %s669 = sdiv.u32.pop %s605, 3
                %s670 = srem.u32.pop %s605, 3
                // While loop
                $region83: #{tpu_custom_call.1} parent=81 // loop_pre_header
                  _
                $region84: #{tpu_custom_call.1} parent=81 // loop_header
                  %s672 = sphi 0, %s674
                  %p673 = scmp.ge.s32.totalorder %s672, %s669
                  %s677 = sphi 0, %s688
                  %s678 = sphi %s598, %s691
                  %s679 = sphi %s609, %s692
                $region85: #{tpu_custom_call.1} parent=81 // loop_header_branch
                  %676 = sbr.rel (%p673) target = $region89
                $region86: #{tpu_custom_call.1} parent=81 // loop_body
                  %v680 = vld [vmem:[%s678] sm:$0xff]
                  %681 = vst [vmem:[%s679] sm:$0xff] %v680
                  %v682 = vld [vmem:[%s678 + $0x8] sm:$0xff]
                  %683 = vst [vmem:[%s679 + $0x8] sm:$0xff] %v682
                  %v684 = vld [vmem:[%s678 + $0x10] sm:$0xff]
                  %685 = vst [vmem:[%s679 + $0x10] sm:$0xff] %v684
                  %s686 = sadd.s32 1, %s677
                  %p687 = scmp.ge.s32.totalorder %s686, %s669
                  %s688 = scalar_select %p687, 0, %s686
                  %s689 = smul.u32 %s688, 24
                  %s690 = smul.u32 %s688, 24
                  %s691 = scalar_lea.vmem %s598, %s689 [#allocation2]
                  %s692 = scalar_lea.vmem %s609, %s690
                $region87: #{tpu_custom_call.1} parent=81 // loop_footer
                  %s674 = sadd.s32 %s672, 1
                $region88: #{tpu_custom_call.1} parent=81 // loop_footer_branch
                  %671 = sbr.rel target = $region84
                $region89: #{tpu_custom_call.1} parent=81 // loop_exit
                  _
                %s693 = sdiv.u32.pop %s605, 3
                %s694 = srem.u32.pop %s605, 3
                %s695 = smul.u32 %s693, 3
                %s696 = smul.u32 8, %s695
                %s697 = scalar_lea.vmem %s598, %s696 [#allocation2]
                %s698 = smul.u32 8, %s695
                %s699 = scalar_lea.vmem %s609, %s698
                // While loop
                $region90: #{tpu_custom_call.1} parent=81 // loop_pre_header
                  _
                $region91: #{tpu_custom_call.1} parent=81 // loop_header
                  %s701 = sphi 0, %s703
                  %p702 = scmp.ge.s32.totalorder %s701, %s694
                  %s706 = sphi 0, %s713
                  %s707 = sphi %s697, %s716
                  %s708 = sphi %s699, %s717
                $region92: #{tpu_custom_call.1} parent=81 // loop_header_branch
                  %705 = sbr.rel (%p702) target = $region96
                $region93: #{tpu_custom_call.1} parent=81 // loop_body
                  %v709 = vld [vmem:[%s707] sm:$0xff]
                  %710 = vst [vmem:[%s708] sm:$0xff] %v709
                  %s711 = sadd.s32 1, %s706
                  %p712 = scmp.ge.s32.totalorder %s711, %s694
                  %s713 = scalar_select %p712, 0, %s711
                  %s714 = smul.u32 %s713, 8
                  %s715 = smul.u32 %s713, 8
                  %s716 = scalar_lea.vmem %s697, %s714 [#allocation2]
                  %s717 = scalar_lea.vmem %s699, %s715
                $region94: #{tpu_custom_call.1} parent=81 // loop_footer
                  %s703 = sadd.s32 %s701, 1
                $region95: #{tpu_custom_call.1} parent=81 // loop_footer_branch
                  %700 = sbr.rel target = $region91
                $region96: #{tpu_custom_call.1} parent=81 // loop_exit
                  _
              $region82: #{tpu_custom_call.1} parent=59 // pred_fallthru
                _
              // Predicated region
              $region97: #{tpu_custom_call.1} parent=59 // pred_check
                _
              $region98: #{tpu_custom_call.1} parent=59 // pred_check_branch
                %719 = sbr.rel target = $region100
              $region99: #{tpu_custom_call.1} parent=59 // pred_region
                _
              $region100: #{tpu_custom_call.1} parent=59 // pred_fallthru
                _
            $region60: #{tpu_custom_call.1} parent=55 // pred_fallthru
              _
            // Predicated region
            $region61: #{tpu_custom_call.1} parent=55 // pred_check
              _
            $region62: #{tpu_custom_call.1} parent=55 // pred_check_branch
              %616 = sbr.rel target = $region64
            $region63: #{tpu_custom_call.1} parent=55 // pred_region
              %s618 = sdiv.u32.pop %s605, 3
              %s619 = srem.u32.pop %s605, 3
              // While loop
              $region65: #{tpu_custom_call.1} parent=63 // loop_pre_header
                _
              $region66: #{tpu_custom_call.1} parent=63 // loop_header
                %s621 = sphi 0, %s623
                %p622 = scmp.ge.s32.totalorder %s621, %s618
                %s626 = sphi 0, %s637
                %s627 = sphi %s598, %s640
                %s628 = sphi %s609, %s641
              $region67: #{tpu_custom_call.1} parent=63 // loop_header_branch
                %625 = sbr.rel (%p622) target = $region71
              $region68: #{tpu_custom_call.1} parent=63 // loop_body
                %v629 = vld [vmem:[%s627] sm:$0xff]
                %630 = vst [vmem:[%s628] sm:$0xff] %v629
                %v631 = vld [vmem:[%s627 + $0x8] sm:$0xff]
                %632 = vst [vmem:[%s628 + $0x8] sm:$0xff] %v631
                %v633 = vld [vmem:[%s627 + $0x10] sm:$0xff]
                %634 = vst [vmem:[%s628 + $0x10] sm:$0xff] %v633
                %s635 = sadd.s32 1, %s626
                %p636 = scmp.ge.s32.totalorder %s635, %s618
                %s637 = scalar_select %p636, 0, %s635
                %s638 = smul.u32 %s637, 24
                %s639 = smul.u32 %s637, 24
                %s640 = scalar_lea.vmem %s598, %s638 [#allocation2]
                %s641 = scalar_lea.vmem %s609, %s639
              $region69: #{tpu_custom_call.1} parent=63 // loop_footer
                %s623 = sadd.s32 %s621, 1
              $region70: #{tpu_custom_call.1} parent=63 // loop_footer_branch
                %620 = sbr.rel target = $region66
              $region71: #{tpu_custom_call.1} parent=63 // loop_exit
                _
              %s642 = sdiv.u32.pop %s605, 3
              %s643 = srem.u32.pop %s605, 3
              %s644 = smul.u32 %s642, 3
              %s645 = smul.u32 8, %s644
              %s646 = scalar_lea.vmem %s598, %s645 [#allocation2]
              %s647 = smul.u32 8, %s644
              %s648 = scalar_lea.vmem %s609, %s647
              // While loop
              $region72: #{tpu_custom_call.1} parent=63 // loop_pre_header
                _
              $region73: #{tpu_custom_call.1} parent=63 // loop_header
                %s650 = sphi 0, %s652
                %p651 = scmp.ge.s32.totalorder %s650, %s643
                %s655 = sphi 0, %s662
                %s656 = sphi %s646, %s665
                %s657 = sphi %s648, %s666
              $region74: #{tpu_custom_call.1} parent=63 // loop_header_branch
                %654 = sbr.rel (%p651) target = $region78
              $region75: #{tpu_custom_call.1} parent=63 // loop_body
                %v658 = vld [vmem:[%s656] sm:$0xff]
                %659 = vst [vmem:[%s657] sm:$0xff] %v658
                %s660 = sadd.s32 1, %s655
                %p661 = scmp.ge.s32.totalorder %s660, %s643
                %s662 = scalar_select %p661, 0, %s660
                %s663 = smul.u32 %s662, 8
                %s664 = smul.u32 %s662, 8
                %s665 = scalar_lea.vmem %s646, %s663 [#allocation2]
                %s666 = scalar_lea.vmem %s648, %s664
              $region76: #{tpu_custom_call.1} parent=63 // loop_footer
                %s652 = sadd.s32 %s650, 1
              $region77: #{tpu_custom_call.1} parent=63 // loop_footer_branch
                %649 = sbr.rel target = $region73
              $region78: #{tpu_custom_call.1} parent=63 // loop_exit
                _
            $region64: #{tpu_custom_call.1} parent=55 // pred_fallthru
              _
          $region56: #{tpu_custom_call.1} parent=51 // pred_fallthru
            _
          %720 = vnop
        $region52: #{tpu_custom_call.1} parent=47 // pred_fallthru
          _
      $region48: #{tpu_custom_call.1} parent=5 // pred_fallthru
        _
      %p721 = scmp.le.s32.totalorder 2, %s13
      // Predicated region
      $region101: #{tpu_custom_call.1} parent=5 // pred_check
        %p722 = pneg %p721
      $region102: #{tpu_custom_call.1} parent=5 // pred_check_branch
        %724 = sbr.rel (%p722) target = $region104
      $region103: #{tpu_custom_call.1} parent=5 // pred_region
        %s725 = ssub.s32 %s13, 2
        // Predicated region
        $region105: #{tpu_custom_call.1} parent=103 // pred_check
          %p726 = pneg %p194
        $region106: #{tpu_custom_call.1} parent=103 // pred_check_branch
          %728 = sbr.rel (%p726) target = $region108
        $region107: #{tpu_custom_call.1} parent=103 // pred_region
          %s729 = sand.u32 %s179, 1
          %s730 = sand.u32 %s179, 1
          %s731 = smul.addr %s730, 24
          %s732 = scalar_lea.vmem [#allocation2], %s731
        $region108: #{tpu_custom_call.1} parent=103 // pred_fallthru
          _
      $region104: #{tpu_custom_call.1} parent=5 // pred_fallthru
        _
    $region6: #{tpu_custom_call.1} parent=1 // loop_footer
      %s17 = sadd.s32 1, %s13
    $region7: #{tpu_custom_call.1} parent=1 // loop_footer_branch
      %12 = sbr.rel target = $region3
    $region8: #{tpu_custom_call.1} parent=1 // loop_exit
      _

</llo_original>
